<compile_context>
chip_gen: v7x
topology: tpu7x:2x2x1
jax: 0.10.0
libtpu: 0.0.40
codegen_flags: <defaults>
</compile_context>

<pallas_src>
import functools

import jax
import jax.numpy as jnp
from jax.experimental import pallas as pl
from jax.experimental.pallas import tpu as pltpu

_LANE = 128                      # vreg lane width: pad vocab axis to a multiple of this
_MAX_TILE_N = 2048               # row-tile cap (multiple of 256), ~5 MiB VMEM budget
_MIN_ROWS_FOR_TWO_TILES = 2048   # split into >=2 tiles above this (v7x has 2 TCs)


def pad_embedding_table(embedding_table):
    """Zero-pad the (V, V) table to (Vp, Vp), Vp = round_up(V, 128).

    Call once at parameter init (hoisted out of the per-step hot path).
    Padded rows are never selected (idx < V) and padded columns are masked out of
    the logsumexp inside the kernel, so the loss stays exact.
    """
    V = embedding_table.shape[0]
    Vp = _LANE * pl.cdiv(V, _LANE)
    return (jnp.zeros((Vp, Vp), jnp.float32)
            .at[:V, :V].set(embedding_table.astype(jnp.float32)))


def _choose_tile_n(N, max_tile_n):
    """Sublane-aligned row tile; prefer >=2 grid tiles when N is large (v7x megacore)."""
    tile = min(max_tile_n, 8 * pl.cdiv(N, 8))
    if tile >= N and N >= _MIN_ROWS_FOR_TWO_TILES:
        tile = 256 * pl.cdiv(pl.cdiv(N, 2), 256)
    return max(8, tile)


def _pad_rows(x, n_extra_rows):
    if n_extra_rows == 0:
        return x
    return jnp.pad(x, ((0, n_extra_rows),) + ((0, 0),) * (x.ndim - 1))


# ---------------------------------------------------------------------------
# Kernels
# ---------------------------------------------------------------------------

def _store_partial(loss_ref, partial):
    """Write the scalar partial into a lane-dense (8, 128) block (unmasked store)."""
    r = jax.lax.broadcasted_iota(jnp.int32, loss_ref.shape, 0)
    c = jax.lax.broadcasted_iota(jnp.int32, loss_ref.shape, 1)
    loss_ref[...] = jnp.where((r == 0) & (c == 0), partial, jnp.float32(0.0))


def _lookup_and_ce(pair_ref, emb_ref, V, N):
    """Shared body: embedding lookup + per-row cross-entropy for one row tile.

    pair_ref: (TILE_N, 2) i32 -- column 0 = idx, column 1 = targets.
    emb_ref:  (Vp, Vp) f32 VMEM-resident padded table.
    Returns (logits (TILE_N, Vp) f32, partial-loss scalar for valid rows).
    """
    tile_n = pair_ref.shape[0]
    vp = emb_ref.shape[1]

    pair = pair_ref[...]                                            # (TILE_N, 2)
    idx = pair[:, 0:1]
    tgt = pair[:, 1:2]

    col = jax.lax.broadcasted_iota(jnp.int32, (tile_n, vp), 1)      # lane index

    # Embedding lookup as one-hot @ table on the MXU (exact: one-hot is 0/1).
    onehot = (col == idx).astype(jnp.float32)                       # (TILE_N, Vp)
    logits = jnp.dot(onehot, emb_ref[...],
                     preferred_element_type=jnp.float32)            # (TILE_N, Vp)

    # Cross-entropy: logsumexp over the V real columns minus the target logit.
    masked = jnp.where(col < V, logits, jnp.float32(-1e30))
    m = jnp.max(masked, axis=-1, keepdims=True)                     # (TILE_N, 1)
    lse = m + jnp.log(jnp.sum(jnp.exp(masked - m), axis=-1, keepdims=True))
    tgt_logit = jnp.sum(jnp.where(col == tgt, logits, jnp.float32(0.0)),
                        axis=-1, keepdims=True)
    per_row = lse - tgt_logit                                       # (TILE_N, 1)

    # Zero rows past the true N (row padding to a whole number of tiles).
    row = (pl.program_id(0) * tile_n
           + jax.lax.broadcasted_iota(jnp.int32, (tile_n, 1), 0))
    per_row = jnp.where(row < N, per_row, jnp.float32(0.0))

    return logits, jnp.sum(per_row)


def _bigram_logits_kernel(idx_ref, emb_ref, logits_ref):
    """Inference path: embedding lookup only (no CE work)."""
    tile_n, vp = logits_ref.shape
    idx = idx_ref[...]                                              # (TILE_N, 1)
    col = jax.lax.broadcasted_iota(jnp.int32, (tile_n, vp), 1)
    onehot = (col == idx).astype(jnp.float32)
    logits = jnp.dot(onehot, emb_ref[...], preferred_element_type=jnp.float32)
    logits_ref[...] = logits.astype(logits_ref.dtype)


def _bigram_loss_logits_kernel(pair_ref, emb_ref, logits_ref, loss_ref, *, V, N):
    """Training path: logits + per-tile loss partial."""
    logits, partial = _lookup_and_ce(pair_ref, emb_ref, V, N)
    logits_ref[...] = logits.astype(logits_ref.dtype)
    _store_partial(loss_ref, partial)


def _bigram_loss_only_kernel(pair_ref, emb_ref, loss_ref, *, V, N):
    """Training fast path: loss only -- no logits HBM writeback at all."""
    _, partial = _lookup_and_ce(pair_ref, emb_ref, V, N)
    _store_partial(loss_ref, partial)


# ---------------------------------------------------------------------------
# Wrapper (mirrors BigramLanguageModel.forward)
# ---------------------------------------------------------------------------

def bigram_forward(idx, embedding_table, targets=None, *, vocab_size=None,
                   loss_only=False, return_padded_logits=False,
                   logits_dtype=jnp.float32, max_tile_n=_MAX_TILE_N):
    """Mirrors BigramLanguageModel.forward.

    idx: (B, T) i32.  embedding_table: either the raw (V, V) table or the
    pre-padded (Vp, Vp) table from pad_embedding_table() (then pass vocab_size=V).
    targets: optional (B, T) i32.

    Returns (logits, loss):
      * logits: (B, T, V) by default; (B, T, Vp) if return_padded_logits=True
        (skips the lane slice that re-materializes the logits); None if loss_only.
      * loss: scalar mean cross-entropy, or None when targets is None.
    """
    B, T = idx.shape
    V = embedding_table.shape[0] if vocab_size is None else vocab_size
    Vp = _LANE * pl.cdiv(V, _LANE)
    if embedding_table.shape != (Vp, Vp):
        # Convenience path; for training loops call pad_embedding_table() once at init.
        embedding_table = pad_embedding_table(embedding_table)

    N = B * T
    TILE_N = _choose_tile_n(N, max_tile_n)
    N_pad = TILE_N * pl.cdiv(N, TILE_N)
    num_tiles = N_pad // TILE_N

    tbl_spec = pl.BlockSpec((Vp, Vp), lambda i: (0, 0))       # VMEM-resident table
    log_spec = pl.BlockSpec((TILE_N, Vp), lambda i: (i, 0))   # lane-dense logits
    loss_spec = pl.BlockSpec((8, _LANE), lambda i: (i, 0))    # lane-dense partials

    compiler_params = pltpu.CompilerParams(
        dimension_semantics=("parallel",),        # rows are independent (megacore)
        vmem_limit_bytes=32 * 1024 * 1024,
    )

    idx_flat = idx.reshape(N).astype(jnp.int32)

    if targets is None:
        # Inference: logits only -- no cross-entropy work, no targets stream.
        idx2d = _pad_rows(idx_flat.reshape(N, 1), N_pad - N)
        logits_pad = pl.pallas_call(
            _bigram_logits_kernel,
            grid=(num_tiles,),
            in_specs=[pl.BlockSpec((TILE_N, 1), lambda i: (i, 0)), tbl_spec],
            out_specs=log_spec,
            out_shape=jax.ShapeDtypeStruct((N_pad, Vp), logits_dtype),
            compiler_params=compiler_params,
        )(idx2d, embedding_table)
        if return_padded_logits:
            return logits_pad[:N].reshape(B, T, Vp), None
        return logits_pad[:N, :V].reshape(B, T, V), None

    tgt_flat = targets.reshape(N).astype(jnp.int32)
    # Pack idx & targets into one (N_pad, 2) stream (single lane-padded input).
    pair = _pad_rows(jnp.stack([idx_flat, tgt_flat], axis=-1), N_pad - N)
    pair_spec = pl.BlockSpec((TILE_N, 2), lambda i: (i, 0))

    if loss_only:
        kernel = functools.partial(_bigram_loss_only_kernel, V=V, N=N)
        partial_loss = pl.pallas_call(
            kernel,
            grid=(num_tiles,),
            in_specs=[pair_spec, tbl_spec],
            out_specs=loss_spec,
            out_shape=jax.ShapeDtypeStruct((num_tiles * 8, _LANE), jnp.float32),
            compiler_params=compiler_params,
        )(pair, embedding_table)
        return None, jnp.sum(partial_loss) / jnp.float32(N)

    kernel = functools.partial(_bigram_loss_logits_kernel, V=V, N=N)
    logits_pad, partial_loss = pl.pallas_call(
        kernel,
        grid=(num_tiles,),
        in_specs=[pair_spec, tbl_spec],
        out_specs=(log_spec, loss_spec),
        out_shape=(
            jax.ShapeDtypeStruct((N_pad, Vp), logits_dtype),
            jax.ShapeDtypeStruct((num_tiles * 8, _LANE), jnp.float32),
        ),
        compiler_params=compiler_params,
    )(pair, embedding_table)

    loss = jnp.sum(partial_loss) / jnp.float32(N)
    if return_padded_logits:
        return logits_pad[:N].reshape(B, T, Vp), loss
    return logits_pad[:N, :V].reshape(B, T, V), loss


# ---------------------------------------------------------------------------
# Reference + demo
# ---------------------------------------------------------------------------

def _reference(idx, table, targets):
    logits = table[idx]                                   # (B, T, V)
    B, T, V = logits.shape
    lf = logits.reshape(B * T, V)
    tf = targets.reshape(B * T)
    lse = jax.scipy.special.logsumexp(lf, axis=-1)
    loss = jnp.mean(lse - lf[jnp.arange(B * T), tf])
    return logits, loss


if __name__ == "__main__":
    B, T, V = 2, 8, 65  # small char-level vocab like the Zelda text

    key = jax.random.PRNGKey(0)
    k_emb, k_idx, k_tgt = jax.random.split(key, 3)

    # Deterministic synthetic parameters (nn.Embedding(vocab_size, vocab_size)).
    embedding_table = jax.random.normal(k_emb, (V, V), dtype=jnp.float32)
    idx = jax.random.randint(k_idx, (B, T), 0, V, dtype=jnp.int32)
    targets = jax.random.randint(k_tgt, (B, T), 0, V, dtype=jnp.int32)

    # Pad the table once at "init" (hoisted out of the hot path).
    padded_table = pad_embedding_table(embedding_table)

    ref_logits, ref_loss = _reference(idx, embedding_table, targets)

    # Training path (logits + loss).
    logits, loss = bigram_forward(idx, padded_table, targets, vocab_size=V)
    jax.block_until_ready((logits, loss))
    assert logits.shape == (B, T, V)
    assert jnp.allclose(logits, ref_logits, atol=1e-5, rtol=1e-5)
    assert jnp.allclose(loss, ref_loss, atol=1e-5, rtol=1e-5)

    # Loss-only fast path (no logits HBM writeback).
    none_logits, loss_only = bigram_forward(idx, padded_table, targets,
                                            vocab_size=V, loss_only=True)
    jax.block_until_ready(loss_only)
    assert none_logits is None
    assert jnp.allclose(loss_only, ref_loss, atol=1e-5, rtol=1e-5)

    # Inference path (logits only, CE skipped entirely).
    logits_inf, loss_inf = bigram_forward(idx, padded_table, None, vocab_size=V)
    jax.block_until_ready(logits_inf)
    assert loss_inf is None
    assert jnp.allclose(logits_inf, ref_logits, atol=1e-5, rtol=1e-5)

    print("KERNEL_OK")
</pallas_src>

<mosaic_0001>
module attributes {stable_mosaic.version = 11 : i64} {
  func.func @_bigram_loss_logits_kernel(%arg0: i32, %arg1: memref<16x2xi32, #tpu.memory_space<vmem>>, %arg2: memref<128x128xf32, #tpu.memory_space<vmem>>, %arg3: memref<16x128xf32, #tpu.memory_space<vmem>>, %arg4: memref<8x128xf32, #tpu.memory_space<vmem>>) attributes {dimension_semantics = [#tpu.dimension_semantics<parallel>], iteration_bounds = array<i64: 1>, scalar_prefetch = 0 : i64, scratch_operands = 0 : i64, tpu.core_type = #tpu.core_type<tc>, window_params = [{transform_indices = @transform_0, window_bounds = array<i64: 16, 2>}, {pipeline_mode = #tpu.pipeline_mode<synchronous>, transform_indices = @transform_1, window_bounds = array<i64: 128, 128>}, {transform_indices = @transform_2, window_bounds = array<i64: 16, 128>}, {transform_indices = @transform_3, window_bounds = array<i64: 8, 128>}]} {
    %c0 = arith.constant 0 : index
    %c0_0 = arith.constant 0 : index
    %0 = vector.load %arg1[%c0, %c0_0] : memref<16x2xi32, #tpu.memory_space<vmem>>, vector<16x2xi32>
    %1 = vector.extract_strided_slice %0 {offsets = [0, 0], sizes = [16, 1], strides = [1, 1]} : vector<16x2xi32> to vector<16x1xi32>
    %2 = vector.extract_strided_slice %0 {offsets = [0, 1], sizes = [16, 1], strides = [1, 1]} : vector<16x2xi32> to vector<16x1xi32>
    %3 = tpu.iota {dimensions = array<i32: 1>} : vector<16x128xi32>
    %4 = vector.broadcast %1 : vector<16x1xi32> to vector<16x128xi32>
    %5 = arith.cmpi eq, %3, %4 : vector<16x128xi32>
    %6 = arith.extui %5 : vector<16x128xi1> to vector<16x128xi32>
    %7 = arith.sitofp %6 : vector<16x128xi32> to vector<16x128xf32>
    %c0_1 = arith.constant 0 : index
    %c0_2 = arith.constant 0 : index
    %8 = vector.load %arg2[%c0_1, %c0_2] : memref<128x128xf32, #tpu.memory_space<vmem>>, vector<128x128xf32>
    %cst = arith.constant dense<0.000000e+00> : vector<16x128xf32>
    %9 = tpu.matmul %7, %8, %cst {dimension_numbers = #tpu.dot_dimension_numbers<[1], [0], [0], [1], [0, 0, 1, 1], [], []>} : vector<16x128xf32>, vector<128x128xf32>, vector<16x128xf32> -> vector<16x128xf32>
    %c65_i32 = arith.constant 65 : i32
    %10 = vector.broadcast %c65_i32 : i32 to vector<16x128xi32>
    %11 = arith.cmpi slt, %3, %10 : vector<16x128xi32>
    %cst_3 = arith.constant -1.000000e+30 : f32
    %12 = vector.broadcast %cst_3 : f32 to vector<16x128xf32>
    %13 = arith.select %11, %9, %12 : vector<16x128xi1>, vector<16x128xf32>
    %cst_4 = arith.constant dense<0xFF800000> : vector<16xf32>
    %14 = vector.multi_reduction <maximumf>, %13, %cst_4 [1] : vector<16x128xf32> to vector<16xf32>
    %15 = vector.shape_cast %14 : vector<16xf32> to vector<16x1xf32>
    %16 = vector.broadcast %15 : vector<16x1xf32> to vector<16x128xf32>
    %17 = arith.subf %13, %16 : vector<16x128xf32>
    %18 = math.exp %17 : vector<16x128xf32>
    %cst_5 = arith.constant dense<0.000000e+00> : vector<16xf32>
    %19 = vector.multi_reduction <add>, %18, %cst_5 [1] : vector<16x128xf32> to vector<16xf32>
    %20 = vector.shape_cast %19 : vector<16xf32> to vector<16x1xf32>
    %21 = math.log %20 : vector<16x1xf32>
    %22 = arith.addf %15, %21 : vector<16x1xf32>
    %23 = vector.broadcast %2 : vector<16x1xi32> to vector<16x128xi32>
    %24 = arith.cmpi eq, %3, %23 : vector<16x128xi32>
    %cst_6 = arith.constant 0.000000e+00 : f32
    %25 = vector.broadcast %cst_6 : f32 to vector<16x128xf32>
    %26 = arith.select %24, %9, %25 : vector<16x128xi1>, vector<16x128xf32>
    %cst_7 = arith.constant dense<0.000000e+00> : vector<16xf32>
    %27 = vector.multi_reduction <add>, %26, %cst_7 [1] : vector<16x128xf32> to vector<16xf32>
    %28 = vector.shape_cast %27 : vector<16xf32> to vector<16x1xf32>
    %29 = arith.subf %22, %28 : vector<16x1xf32>
    %c16_i32 = arith.constant 16 : i32
    %30 = arith.muli %arg0, %c16_i32 : i32
    %31 = tpu.iota {dimensions = array<i32: 0>} : vector<16x1xi32>
    %32 = vector.broadcast %30 : i32 to vector<16x1xi32>
    %33 = arith.addi %32, %31 : vector<16x1xi32>
    %c16_i32_8 = arith.constant 16 : i32
    %34 = vector.broadcast %c16_i32_8 : i32 to vector<16x1xi32>
    %35 = arith.cmpi slt, %33, %34 : vector<16x1xi32>
    %cst_9 = arith.constant 0.000000e+00 : f32
    %36 = vector.broadcast %cst_9 : f32 to vector<16x1xf32>
    %37 = arith.select %35, %29, %36 : vector<16x1xi1>, vector<16x1xf32>
    %38 = vector.shape_cast %37 : vector<16x1xf32> to vector<1x16x1xf32>
    %cst_10 = arith.constant dense<0.000000e+00> : vector<1xf32>
    %39 = vector.multi_reduction <add>, %38, %cst_10 [1, 2] : vector<1x16x1xf32> to vector<1xf32>
    %40 = vector.shape_cast %39 : vector<1xf32> to vector<1x1x1xf32>
    %41 = vector.extract %40[0, 0, 0] : f32 from vector<1x1x1xf32>
    %c0_11 = arith.constant 0 : index
    %c0_12 = arith.constant 0 : index
    %42 = vector.load %arg3[%c0_11, %c0_12] : memref<16x128xf32, #tpu.memory_space<vmem>>, vector<16x128xf32>
    tpu.vector_store %arg3[%c0_11, %c0_12], %9 {strides = array<i32>} : memref<16x128xf32, #tpu.memory_space<vmem>>, vector<16x128xf32>,
    %43 = tpu.iota {dimensions = array<i32: 0>} : vector<8x128xi32>
    %44 = tpu.iota {dimensions = array<i32: 1>} : vector<8x128xi32>
    %c0_i32 = arith.constant 0 : i32
    %45 = vector.broadcast %c0_i32 : i32 to vector<8x128xi32>
    %46 = arith.cmpi eq, %43, %45 : vector<8x128xi32>
    %c0_i32_13 = arith.constant 0 : i32
    %47 = vector.broadcast %c0_i32_13 : i32 to vector<8x128xi32>
    %48 = arith.cmpi eq, %44, %47 : vector<8x128xi32>
    %49 = arith.andi %46, %48 : vector<8x128xi1>
    %cst_14 = arith.constant 0.000000e+00 : f32
    %50 = vector.broadcast %41 : f32 to vector<8x128xf32>
    %51 = vector.broadcast %cst_14 : f32 to vector<8x128xf32>
    %52 = arith.select %49, %50, %51 : vector<8x128xi1>, vector<8x128xf32>
    %c0_15 = arith.constant 0 : index
    %c0_16 = arith.constant 0 : index
    %53 = vector.load %arg4[%c0_15, %c0_16] : memref<8x128xf32, #tpu.memory_space<vmem>>, vector<8x128xf32>
    tpu.vector_store %arg4[%c0_15, %c0_16], %52 {strides = array<i32>} : memref<8x128xf32, #tpu.memory_space<vmem>>, vector<8x128xf32>,
    return
  }
  func.func @transform_0(%arg0: i32) -> (i32, i32) {
    %c0_i32 = arith.constant 0 : i32
    %c0_i32_0 = arith.constant 0 : i32
    return %arg0, %c0_i32 : i32, i32
  }
  func.func @transform_1(%arg0: i32) -> (i32, i32) {
    %c0_i32 = arith.constant 0 : i32
    %c0_i32_0 = arith.constant 0 : i32
    %c0_i32_1 = arith.constant 0 : i32
    return %c0_i32, %c0_i32_0 : i32, i32
  }
  func.func @transform_2(%arg0: i32) -> (i32, i32) {
    %c0_i32 = arith.constant 0 : i32
    %c0_i32_0 = arith.constant 0 : i32
    return %arg0, %c0_i32 : i32, i32
  }
  func.func @transform_3(%arg0: i32) -> (i32, i32) {
    %c0_i32 = arith.constant 0 : i32
    %c0_i32_0 = arith.constant 0 : i32
    return %arg0, %c0_i32 : i32, i32
  }
}

</mosaic_0001>

<llo_original>
// kernel: tpu_custom_call.1
$region0: #{tpu_custom_call.1}
  #allocation0 [shape = 'u32[]', space=smem, size = 0x4, offset = 0x4, fixed_abs, tag = 'smem constant byte address 0x4 - core index']
  #allocation1 [shape = 'u32[144,128]{1,0:T(1,128)}', space=vmem, size = 0x12000, scoped, tag = 'internal scratch']
  %s0 = inlined_call_operand.vmem [shape: s32[16,2], index: 0, kind: input, shape index: {}]
  %s1 = inlined_call_operand.hbm [shape: f32[128,128], index: 1, kind: input, shape index: {}]
  %s2 = inlined_call_operand.hbm [shape: f32[16,128], index: 2, kind: output, shape index: {0}]
  %s3 = inlined_call_operand.hbm [shape: f32[8,128], index: 3, kind: output, shape index: {1}]
  %4 = xla_tuple %s2, %s3
  %s5 = sld [smem:[#allocation0]]
  $region30: #{tpu_custom_call.1} parent=0
    _
  %s7 = ssub.s32 1, %s5
  %s8 = scalar_select 0, %s7, %s5
  $region1: #{tpu_custom_call.1} parent=0
    #allocation2 [shape = 'u8[65536]{0}', space=vmem, size = 0x10000, scoped, tag = 'input window, operand 1, single buffered']
    #allocation3 [shape = 's32[1]{0}', space=sflag, size = 0x4, scoped, tag = 'scoped memory for tpu_custom_call.1']
    #allocation4 [shape = 's32[1]{0}', space=sflag, size = 0x4, scoped, tag = 'scoped memory for tpu_custom_call.1']
    #allocation5 [shape = 'u8[8192]{0}', space=vmem, size = 0x2000, scoped, tag = 'output window, operand 0, single buffered']
    #allocation6 [shape = 'u8[4096]{0}', space=vmem, size = 0x1000, scoped, tag = 'output window, operand 1, single buffered']
    #allocation7 [shape = 's32[1]{0}', space=sflag, size = 0x4, scoped, tag = 'scoped memory for tpu_custom_call.1']
    %9 = vsyncpa [#allocation3], 0
    %10 = vsyncpa [#allocation4], 0
    %11 = vsyncpa [#allocation7], 0
    // Predicated region
    $region2: #{tpu_custom_call.1} parent=1 // pred_check
      _
    $region3: #{tpu_custom_call.1} parent=1 // pred_check_branch
      %13 = sbr.rel (0) target = $region5
    $region4: #{tpu_custom_call.1} parent=1 // pred_region
      _
    $region5: #{tpu_custom_call.1} parent=1 // pred_fallthru
      _
    // Predicated region
    $region6: #{tpu_custom_call.1} parent=1 // pred_check
      _
    $region7: #{tpu_custom_call.1} parent=1 // pred_check_branch
      %15 = sbr.rel (0) target = $region9
    $region8: #{tpu_custom_call.1} parent=1 // pred_region
      %s17 = ssub.s32 2048, 2048
      %18 = vsyncadd [#allocation3], %s17
      %s19 = sshll.u32 [#allocation2], 4
      %s20 = int_to_ptr.vmem [resolvable:$true] %s19
      %25 = dma.hbm_to_vmem [thread:$0]  %s1, 2048, %s20, [#allocation3], 128, 128, 8
    $region9: #{tpu_custom_call.1} parent=1 // pred_fallthru
      _
    // Predicated region
    $region10: #{tpu_custom_call.1} parent=1 // pred_check
      _
    $region11: #{tpu_custom_call.1} parent=1 // pred_check_branch
      %27 = sbr.rel (0) target = $region13
    $region12: #{tpu_custom_call.1} parent=1 // pred_region
      %28 = dma.done [#allocation3], 2048
    $region13: #{tpu_custom_call.1} parent=1 // pred_fallthru
      _
    %v29 = vld [vmem:[%s0] sm:$0xff]
    %v30 = vld [vmem:[%s0 + $0x8] sm:$0xff]
    %v31 = vlaneseq
    %v32 = vand.u32 %v31, 127
    %33 = vset.pattern.permute.xlu0 0
    %34 = vperm.xlu0 %33, %v29
    %v35 = vpop.permute.xlu0 %34
    %36 = vset.pattern.permute.xlu0 0
    %37 = vperm.xlu0 %36, %v30
    %v38 = vpop.permute.xlu0 %37
    %vm39 = vcmp.eq.s32.totalorder %v32, %v35
    %vm40 = vcmp.eq.s32.totalorder %v32, %v38
    %v41 = vsel %vm39, 1, 0
    %v42 = vsel %vm40, 1, 0
    %v43 = vcvt.s32.f32 %v41
    %v44 = vcvt.s32.f32 %v42
    %v45 = vld [vmem:[#allocation2] sm:$0xff]
    %v46 = vld [vmem:[#allocation2 + $0x8] sm:$0xff]
    %v47 = vld [vmem:[#allocation2 + $0x10] sm:$0xff]
    %v48 = vld [vmem:[#allocation2 + $0x18] sm:$0xff]
    %v49 = vld [vmem:[#allocation2 + $0x20] sm:$0xff]
    %v50 = vld [vmem:[#allocation2 + $0x28] sm:$0xff]
    %v51 = vld [vmem:[#allocation2 + $0x30] sm:$0xff]
    %v52 = vld [vmem:[#allocation2 + $0x38] sm:$0xff]
    %v53 = vld [vmem:[#allocation2 + $0x40] sm:$0xff]
    %v54 = vld [vmem:[#allocation2 + $0x48] sm:$0xff]
    %v55 = vld [vmem:[#allocation2 + $0x50] sm:$0xff]
    %v56 = vld [vmem:[#allocation2 + $0x58] sm:$0xff]
    %v57 = vld [vmem:[#allocation2 + $0x60] sm:$0xff]
    %v58 = vld [vmem:[#allocation2 + $0x68] sm:$0xff]
    %v59 = vld [vmem:[#allocation2 + $0x70] sm:$0xff]
    %v60 = vld [vmem:[#allocation2 + $0x78] sm:$0xff]
    %61 = vmatprep.subr.mxu0 0.0
    %62 = vmatpush1.msra.mxu0 %v45
    %63 = vmatprep.subr.mxu0 0.0
    %64 = vmatpush1.msra.mxu0 %v46
    %65 = vmatprep.subr.mxu0 0.0
    %66 = vmatpush1.msra.mxu0 %v47
    %67 = vmatprep.subr.mxu0 0.0
    %68 = vmatpush1.msra.mxu0 %v48
    %69 = vmatprep.subr.mxu0 0.0
    %70 = vmatpush1.msra.mxu0 %v49
    %71 = vmatprep.subr.mxu0 0.0
    %72 = vmatpush1.msra.mxu0 %v50
    %73 = vmatprep.subr.mxu0 0.0
    %74 = vmatpush1.msra.mxu0 %v51
    %75 = vmatprep.subr.mxu0 0.0
    %76 = vmatpush1.msra.mxu0 %v52
    %77 = vmatprep.subr.mxu0 0.0
    %78 = vmatpush1.msra.mxu0 %v53
    %79 = vmatprep.subr.mxu0 0.0
    %80 = vmatpush1.msra.mxu0 %v54
    %81 = vmatprep.subr.mxu0 0.0
    %82 = vmatpush1.msra.mxu0 %v55
    %83 = vmatprep.subr.mxu0 0.0
    %84 = vmatpush1.msra.mxu0 %v56
    %85 = vmatprep.subr.mxu0 0.0
    %86 = vmatpush1.msra.mxu0 %v57
    %87 = vmatprep.subr.mxu0 0.0
    %88 = vmatpush1.msra.mxu0 %v58
    %89 = vmatprep.subr.mxu0 0.0
    %90 = vmatpush1.msra.mxu0 %v59
    %91 = vmatprep.subr.mxu0 0.0
    %92 = vmatpush1.msra.mxu0 %v60
    %93 = vmatprep.subr.mxu0 0.0
    %94 = vmatpush1.msra.mxu0 0.0
    %95 = vmatprep.subr.mxu0 0.0
    %96 = vmatpush1.msra.mxu0 0.0
    %97 = vmatprep.subr.mxu0 0.0
    %98 = vmatpush1.msra.mxu0 0.0
    %99 = vmatprep.subr.mxu0 0.0
    %100 = vmatpush1.msra.mxu0 0.0
    %101 = vmatprep.subr.mxu0 0.0
    %102 = vmatpush1.msra.mxu0 0.0
    %103 = vmatprep.subr.mxu0 0.0
    %104 = vmatpush1.msra.mxu0 0.0
    %105 = vmatprep.subr.mxu0 0.0
    %106 = vmatpush1.msra.mxu0 0.0
    %107 = vmatprep.subr.mxu0 0.0
    %108 = vmatpush1.msra.mxu0 0.0
    %109 = vmatprep.subr.mxu0 0.0
    %110 = vmatpush1.msra.mxu0 0.0
    %111 = vmatprep.subr.mxu0 0.0
    %112 = vmatpush1.msra.mxu0 0.0
    %113 = vmatprep.subr.mxu0 0.0
    %114 = vmatpush1.msra.mxu0 0.0
    %115 = vmatprep.subr.mxu0 0.0
    %116 = vmatpush1.msra.mxu0 0.0
    %117 = vmatprep.subr.mxu0 0.0
    %118 = vmatpush1.msra.mxu0 0.0
    %119 = vmatprep.subr.mxu0 0.0
    %120 = vmatpush1.msra.mxu0 0.0
    %121 = vmatprep.subr.mxu0 0.0
    %122 = vmatpush1.msra.mxu0 0.0
    %123 = vmatprep.subr.mxu0 0.0
    %124 = vmatpush1.msra.mxu0 0.0
    %125 = vmatprep.mubr.f32.mxu0 0.0
    %126 = vmatmul.mubr.f32.gmra.mrb[0].mxu0 %v43
    %v127 = vpop.f32.mrb[0].mxu0
    %v128 = vadd.f32 0.0, %v127
    %v129 = vpop.f32.mrb[0].mxu0
    %130 = vmatprep.mubr.f32.mxu0 0.0
    %131 = vmatmul.mubr.f32.gmra.mrb[0].mxu0 %v44
    %v132 = vpop.f32.mrb[0].mxu0
    %v133 = vadd.f32 0.0, %v132
    %v134 = vpop.f32.mrb[0].mxu0
    %135 = vdwg.mxu0
    %vm136 = vcmp.lt.s32.totalorder %v32, 65
    %v137 = vsel %vm136, %v128, -1e+30
    %v138 = vsel %vm136, %v133, -1e+30
    %139 = vmax.xlane.f32.xlu0 %v137
    %v140 = vpop.xlane.xlu0 %139
    %141 = vmax.xlane.f32.xlu0 %v138
    %v142 = vpop.xlane.xlu0 %141
    %v143 = vsub.f32 %v137, %v140
    %v144 = vsub.f32 %v138, %v142
    %v145 = vmul.f32 %v143, 1.442695
    %v146 = vpow.pop %v145
    %v147 = vmul.f32 %v144, 1.442695
    %v148 = vpow.pop %v147
    %149 = vadd.xlane.f32.xlu0 %v146
    %v150 = vpop.xlane.xlu0 %149
    %151 = vadd.xlane.f32.xlu0 %v148
    %v152 = vpop.xlane.xlu0 %151
    %v153 = vlog2.pop %v150
    %v154 = vmul.f32 %v153, 0.6931472
    %v155 = vlog2.pop %v152
    %v156 = vmul.f32 %v155, 0.6931472
    %v157 = vadd.f32 %v140, %v154
    %v158 = vadd.f32 %v142, %v156
    %159 = vset.pattern.permute.xlu0 1
    %160 = vperm.xlu0 %159, %v29
    %v161 = vpop.permute.xlu0 %160
    %162 = vset.pattern.permute.xlu0 1
    %163 = vperm.xlu0 %162, %v30
    %v164 = vpop.permute.xlu0 %163
    %vm165 = vcmp.eq.s32.totalorder %v32, %v161
    %vm166 = vcmp.eq.s32.totalorder %v32, %v164
    %v167 = vsel %vm165, %v128, 0.0
    %v168 = vsel %vm166, %v133, 0.0
    %169 = vadd.xlane.f32.xlu0 %v167
    %v170 = vpop.xlane.xlu0 %169
    %171 = vadd.xlane.f32.xlu0 %v168
    %v172 = vpop.xlane.xlu0 %171
    %v173 = vsub.f32 %v157, %v170
    %v174 = vsub.f32 %v158, %v172
    %s175 = smul.u32 0, 16
    %v176 = vlaneseq
    %v177 = vshrl.u32 %v176, 7
    %v178 = vadd.s32 %v177, 8
    %v179 = vstv %s175
    %v180 = vadd.s32 %v179, %v177
    %v181 = vadd.s32 %v179, %v178
    %vm182 = vcmp.lt.s32.totalorder %v180, 16
    %vm183 = vcmp.lt.s32.totalorder %v181, 16
    %v184 = vsel %vm182, %v173, 0.0
    %v185 = vsel %vm183, %v174, 0.0
    %vm186 = vcmask 7168
    %v187 = vsel %vm186, %v184, 0.0
    %v188 = vsel %vm186, %v185, 0.0
    %v189 = vadd.f32 %v187, %v188
    %190 = vadd.xlane.f32.xlu0 %v189
    %v191 = vpop.xlane.xlu0 %190
    %v192 = vrot.slane %v191, 4
    %v193 = vadd.f32 %v191, %v192
    %v194 = vrot.slane %v193, 2
    %v195 = vadd.f32 %v193, %v194
    %v196 = vrot.slane %v195, 1
    %v197 = vadd.f32 %v195, %v196
    %s198 = vtos %v197
    %199 = vst [vmem:[#allocation5] sm:$0xff] %v128
    %200 = vst [vmem:[#allocation5 + $0x8] sm:$0xff] %v133
    %vm201 = vcmp.eq.s32.totalorder %v177, 0
    %vm202 = vcmp.eq.s32.totalorder %v32, 0
    %vm203 = vmand %vm201, %vm202
    %v204 = vstv %s198
    %v205 = vsel %vm203, %v204, 0.0
    %206 = vst [vmem:[#allocation6] sm:$0xff] %v205
    // Predicated region
    $region14: #{tpu_custom_call.1} parent=1 // pred_check
      _
    $region15: #{tpu_custom_call.1} parent=1 // pred_check_branch
      %208 = sbr.rel (0) target = $region17
    $region16: #{tpu_custom_call.1} parent=1 // pred_region
      %s210 = ssub.s32 256, 256
      %211 = vsyncadd [#allocation4], %s210
      %s212 = sshll.u32 [#allocation5], 4
      %s213 = int_to_ptr.vmem [resolvable:$true] %s212
      %218 = dma.vmem_to_hbm [thread:$0]  %s213, 256, %s2, [#allocation4], 128, 128, 8
    $region17: #{tpu_custom_call.1} parent=1 // pred_fallthru
      _
    // Predicated region
    $region18: #{tpu_custom_call.1} parent=1 // pred_check
      _
    $region19: #{tpu_custom_call.1} parent=1 // pred_check_branch
      %220 = sbr.rel (0) target = $region21
    $region20: #{tpu_custom_call.1} parent=1 // pred_region
      %s222 = ssub.s32 128, 128
      %223 = vsyncadd [#allocation7], %s222
      %s225 = sshll.u32 [#allocation6], 4
      %s226 = int_to_ptr.vmem [resolvable:$true] %s225
      %228 = dma.vmem_to_hbm [thread:$0]  %s226, 128, %s3, [#allocation7]
    $region21: #{tpu_custom_call.1} parent=1 // pred_fallthru
      _
    // Predicated region
    $region22: #{tpu_custom_call.1} parent=1 // pred_check
      _
    $region23: #{tpu_custom_call.1} parent=1 // pred_check_branch
      %230 = sbr.rel (0) target = $region25
    $region24: #{tpu_custom_call.1} parent=1 // pred_region
      %231 = dma.done [#allocation4], 256
    $region25: #{tpu_custom_call.1} parent=1 // pred_fallthru
      _
    // Predicated region
    $region26: #{tpu_custom_call.1} parent=1 // pred_check
      _
    $region27: #{tpu_custom_call.1} parent=1 // pred_check_branch
      %233 = sbr.rel (0) target = $region29
    $region28: #{tpu_custom_call.1} parent=1 // pred_region
      %234 = dma.done [#allocation7], 128
    $region29: #{tpu_custom_call.1} parent=1 // pred_fallthru
      _
    %235 = vsyncpa [#allocation3], 1
    %236 = vsyncpa [#allocation4], 1
    %237 = vsyncpa [#allocation7], 1

</llo_original>
